<compile_context>
chip_gen: v7x
topology: tpu7x:2x2x1
jax: 0.10.0
libtpu: 0.0.40
codegen_flags: <defaults>
</compile_context>

<pallas_src>
import functools
import math

import jax
import jax.numpy as jnp
from jax.experimental import pallas as pl
from jax.experimental.pallas import tpu as pltpu


def _round_up(x, m):
    return ((x + m - 1) // m) * m


# -----------------------------------------------------------------------------
# Node kernel: fused h_node_x / h_node_z embedding lookup, channel-first output.
# -----------------------------------------------------------------------------
def _node_kernel(ids_ref, table_ref, out_ref):
    # ids_ref:   [1, TILE_N]    int32 species ids (lane-dense along nodes)
    # table_ref: [16, S_pad]    f32 fused (x | z) embedding table, transposed
    # out_ref:   [16, TILE_N]   f32 (rows 0..7 -> embed_x, rows 8..15 -> embed_z)
    ids = ids_ref[...]                                        # [1, TILE_N]
    s_pad = table_ref.shape[1]
    tile_n = ids.shape[1]
    iota_s = jax.lax.broadcasted_iota(jnp.int32, (s_pad, tile_n), 0)
    onehot_t = (iota_s == ids).astype(jnp.float32)            # [S_pad, TILE_N]
    out_ref[...] = jnp.dot(table_ref[...], onehot_t,
                           preferred_element_type=jnp.float32)


# -----------------------------------------------------------------------------
# Edge kernel: fused gather + bond vector + norm + Bessel basis.
# -----------------------------------------------------------------------------
def _edge_kernel(cutoff, num_basis, ei_ref, pos_ref, ea_ref, h_ref):
    # ei_ref:  [2, TILE_E]          int32 (row 0 = edge_index[0], row 1 = edge_index[1])
    # pos_ref: [8, N_pad]           f32  (rows 0..2 = x,y,z; rows 3..7 = 0), VMEM-resident
    # ea_ref:  [8, TILE_E]          f32  out (rows 0..2 = bond vector)
    # h_ref:   [num_basis, TILE_E]  f32  out
    send = ei_ref[0:1, :]                                     # [1, TILE_E]
    recv = ei_ref[1:2, :]                                     # [1, TILE_E]
    n_pad = pos_ref.shape[1]
    tile_e = send.shape[1]

    # Gather-and-subtract in one MXU matmul: D[n, e] = 1{recv[e]==n} - 1{send[e]==n}
    iota_n = jax.lax.broadcasted_iota(jnp.int32, (n_pad, tile_e), 0)
    d = ((iota_n == recv).astype(jnp.float32)
         - (iota_n == send).astype(jnp.float32))              # [N_pad, TILE_E]
    ea = jnp.dot(pos_ref[...], d,
                 preferred_element_type=jnp.float32)          # [8, TILE_E]
    ea_ref[...] = ea

    ex = ea[0:1, :]
    ey = ea[1:2, :]
    ez = ea[2:3, :]
    r2 = ex * ex + ey * ey + ez * ez                          # [1, TILE_E] pure VPU
    r = jnp.sqrt(r2)

    eps = 1e-12
    small = r < eps
    inv_r = pl.reciprocal(jnp.where(small, 1.0, r), approx=True)

    prefac = math.sqrt(2.0 / cutoff)
    theta = (math.pi / cutoff) * r
    sin_t = jnp.sin(theta)
    two_cos_t = 2.0 * jnp.cos(theta)

    # sin(n*theta) via Chebyshev recurrence (only one sin + one cos on the EUP).
    s_prev = jnp.zeros_like(r)     # sin(0 * theta)
    s_cur = sin_t                  # sin(1 * theta)
    rows = []
    for n in range(1, num_basis + 1):
        limit = float(n) * math.pi / cutoff                   # lim_{r->0} sin(n*pi*r/c)/r
        rows.append(prefac * jnp.where(small, limit, s_cur * inv_r))
        s_next = two_cos_t * s_cur - s_prev
        s_prev, s_cur = s_cur, s_next
    h_ref[...] = jnp.concatenate(rows, axis=0)                # [num_basis, TILE_E]


# -----------------------------------------------------------------------------
# Wrapper
# -----------------------------------------------------------------------------
def initial_embedding_forward(species, positions, edge_index, embed_x, embed_z,
                              cutoff=4.0, num_basis=16,
                              tile_n=512, tile_e=512,
                              vmem_limit_bytes=32 * 1024 * 1024):
    """Pallas forward pass of InitialEmbedding (pbc=False).

    Returns dict with h_node_x [N,8], h_node_z [N,8], edge_attr [E,3],
    h_edge [E,num_basis] (matching the PyTorch module's data fields).
    """
    n = species.shape[0]
    e = edge_index.shape[1]
    s = embed_x.shape[0]

    # ----------------------------- node path -----------------------------
    tile_n = min(tile_n, _round_up(n, 128))
    n_pad = _round_up(n, tile_n)
    s_pad = _round_up(s, 128)   # pad species axis so the matmul K dim is aligned

    # Fused, transposed embedding table: [16, S_pad] (two independent tables).
    table = jnp.concatenate([embed_x, embed_z], axis=1).astype(jnp.float32)   # [S, 16]
    table_t = jnp.zeros((16, s_pad), jnp.float32).at[:, :s].set(table.T)

    ids = jnp.zeros((1, n_pad), jnp.int32).at[0, :n].set(species.astype(jnp.int32))

    node_out = pl.pallas_call(
        _node_kernel,
        out_shape=jax.ShapeDtypeStruct((16, n_pad), jnp.float32),
        grid=(n_pad // tile_n,),
        in_specs=[
            pl.BlockSpec((1, tile_n), lambda i: (0, i)),
            pl.BlockSpec((16, s_pad), lambda i: (0, 0)),      # resident fused table
        ],
        out_specs=pl.BlockSpec((16, tile_n), lambda i: (0, i)),
        compiler_params=pltpu.CompilerParams(
            dimension_semantics=("parallel",),
            vmem_limit_bytes=vmem_limit_bytes),
    )(ids, table_t)

    h_node_x = node_out[:8, :n].T          # [N, 8]
    h_node_z = node_out[8:, :n].T          # [N, 8]

    # ----------------------------- edge path -----------------------------
    tile_e = min(tile_e, _round_up(e, 128))
    e_pad = _round_up(e, tile_e)
    n_pos_pad = _round_up(n, 128)

    pos_t = jnp.zeros((8, n_pos_pad), jnp.float32).at[:3, :n].set(
        positions.astype(jnp.float32).T)
    ei = jnp.zeros((2, e_pad), jnp.int32).at[:, :e].set(edge_index.astype(jnp.int32))

    edge_attr_t, h_edge_t = pl.pallas_call(
        functools.partial(_edge_kernel, float(cutoff), int(num_basis)),
        out_shape=(
            jax.ShapeDtypeStruct((8, e_pad), jnp.float32),
            jax.ShapeDtypeStruct((num_basis, e_pad), jnp.float32),
        ),
        grid=(e_pad // tile_e,),
        in_specs=[
            pl.BlockSpec((2, tile_e), lambda i: (0, i)),
            pl.BlockSpec((8, n_pos_pad), lambda i: (0, 0)),   # resident positions slab
        ],
        out_specs=(
            pl.BlockSpec((8, tile_e), lambda i: (0, i)),
            pl.BlockSpec((num_basis, tile_e), lambda i: (0, i)),
        ),
        compiler_params=pltpu.CompilerParams(
            dimension_semantics=("parallel",),
            vmem_limit_bytes=vmem_limit_bytes),
    )(ei, pos_t)

    edge_attr = edge_attr_t[:3, :e].T          # [E, 3]
    h_edge = h_edge_t[:, :e].T                 # [E, num_basis]

    return {
        "h_node_x": h_node_x,
        "h_node_z": h_node_z,
        "edge_attr": edge_attr,
        "h_edge": h_edge,
    }


# -----------------------------------------------------------------------------
# Pure-JAX reference (mirrors the PyTorch module, pbc=False path).
# -----------------------------------------------------------------------------
def _reference_forward(species, positions, edge_index, embed_x, embed_z,
                       cutoff=4.0, num_basis=16):
    h_x = embed_x[species]
    h_z = embed_z[species]
    ea = positions[edge_index[1]] - positions[edge_index[0]]
    r = jnp.sqrt(jnp.sum(ea * ea, axis=-1))
    freq = jnp.arange(1, num_basis + 1, dtype=jnp.float32)
    prefac = math.sqrt(2.0 / cutoff)
    h_e = prefac * jnp.sin(freq[None, :] * math.pi * r[:, None] / cutoff) / r[:, None]
    return h_x, h_z, ea, h_e


if __name__ == "__main__":
    key = jax.random.PRNGKey(0)
    k_sp, k_pos, k_send, k_off, k_ex, k_ez = jax.random.split(key, 6)

    num_species = 5
    cutoff = 4.0
    n_nodes = 300
    n_edges = 800

    species = jax.random.randint(k_sp, (n_nodes,), 0, num_species, dtype=jnp.int32)
    positions = jax.random.uniform(k_pos, (n_nodes, 3), jnp.float32, 0.0, cutoff)
    send = jax.random.randint(k_send, (n_edges,), 0, n_nodes, dtype=jnp.int32)
    off = jax.random.randint(k_off, (n_edges,), 1, n_nodes, dtype=jnp.int32)
    recv = (send + off) % n_nodes                     # guarantees send != recv (r > 0)
    edge_index = jnp.stack([send, recv], axis=0)      # [2, E]
    embed_x = jax.random.normal(k_ex, (num_species, 8), jnp.float32)
    embed_z = jax.random.normal(k_ez, (num_species, 8), jnp.float32)

    out = initial_embedding_forward(species, positions, edge_index,
                                    embed_x, embed_z, cutoff=cutoff)
    out = jax.block_until_ready(out)

    ref_hx, ref_hz, ref_ea, ref_he = _reference_forward(
        species, positions, edge_index, embed_x, embed_z, cutoff=cutoff)

    def _check(name, got, want, rtol, atol):
        if not bool(jnp.allclose(got, want, rtol=rtol, atol=atol)):
            err = float(jnp.max(jnp.abs(got - want)))
            raise AssertionError(f"{name} mismatch, max abs err {err}")

    _check("h_node_x", out["h_node_x"], ref_hx, 1e-4, 1e-4)
    _check("h_node_z", out["h_node_z"], ref_hz, 1e-4, 1e-4)
    _check("edge_attr", out["edge_attr"], ref_ea, 1e-4, 1e-4)
    _check("h_edge", out["h_edge"], ref_he, 2e-2, 2e-2)

    print("KERNEL_OK")
</pallas_src>

<mosaic_0001>
module attributes {stable_mosaic.version = 11 : i64} {
  func.func @_node_kernel(%arg0: i32, %arg1: memref<1x384xi32, #tpu.memory_space<vmem>>, %arg2: memref<16x128xf32, #tpu.memory_space<vmem>>, %arg3: memref<16x384xf32, #tpu.memory_space<vmem>>) attributes {dimension_semantics = [#tpu.dimension_semantics<parallel>], iteration_bounds = array<i64: 1>, scalar_prefetch = 0 : i64, scratch_operands = 0 : i64, tpu.core_type = #tpu.core_type<tc>, window_params = [{transform_indices = @transform_0, window_bounds = array<i64: 1, 384>}, {pipeline_mode = #tpu.pipeline_mode<synchronous>, transform_indices = @transform_1, window_bounds = array<i64: 16, 128>}, {transform_indices = @transform_2, window_bounds = array<i64: 16, 384>}]} {
    %c0 = arith.constant 0 : index
    %c0_0 = arith.constant 0 : index
    %0 = vector.load %arg1[%c0, %c0_0] : memref<1x384xi32, #tpu.memory_space<vmem>>, vector<1x384xi32>
    %1 = tpu.iota {dimensions = array<i32: 0>} : vector<128x384xi32>
    %2 = vector.broadcast %0 : vector<1x384xi32> to vector<128x384xi32>
    %3 = arith.cmpi eq, %1, %2 : vector<128x384xi32>
    %4 = arith.extui %3 : vector<128x384xi1> to vector<128x384xi32>
    %5 = arith.sitofp %4 : vector<128x384xi32> to vector<128x384xf32>
    %c0_1 = arith.constant 0 : index
    %c0_2 = arith.constant 0 : index
    %6 = vector.load %arg2[%c0_1, %c0_2] : memref<16x128xf32, #tpu.memory_space<vmem>>, vector<16x128xf32>
    %cst = arith.constant dense<0.000000e+00> : vector<16x384xf32>
    %7 = tpu.matmul %6, %5, %cst {dimension_numbers = #tpu.dot_dimension_numbers<[1], [0], [0], [1], [0, 0, 1, 1], [], []>} : vector<16x128xf32>, vector<128x384xf32>, vector<16x384xf32> -> vector<16x384xf32>
    %c0_3 = arith.constant 0 : index
    %c0_4 = arith.constant 0 : index
    %8 = vector.load %arg3[%c0_3, %c0_4] : memref<16x384xf32, #tpu.memory_space<vmem>>, vector<16x384xf32>
    tpu.vector_store %arg3[%c0_3, %c0_4], %7 {strides = array<i32>} : memref<16x384xf32, #tpu.memory_space<vmem>>, vector<16x384xf32>,
    return
  }
  func.func @transform_0(%arg0: i32) -> (i32, i32) {
    %c0_i32 = arith.constant 0 : i32
    %c0_i32_0 = arith.constant 0 : i32
    return %c0_i32, %arg0 : i32, i32
  }
  func.func @transform_1(%arg0: i32) -> (i32, i32) {
    %c0_i32 = arith.constant 0 : i32
    %c0_i32_0 = arith.constant 0 : i32
    %c0_i32_1 = arith.constant 0 : i32
    return %c0_i32, %c0_i32_0 : i32, i32
  }
  func.func @transform_2(%arg0: i32) -> (i32, i32) {
    %c0_i32 = arith.constant 0 : i32
    %c0_i32_0 = arith.constant 0 : i32
    return %c0_i32, %arg0 : i32, i32
  }
}

</mosaic_0001>

<llo_original>
// kernel: tpu_custom_call.1
$region0: #{tpu_custom_call.1}
  #allocation0 [shape = 'u32[]', space=smem, size = 0x4, offset = 0x4, fixed_abs, tag = 'smem constant byte address 0x4 - core index']
  #allocation1 [shape = 'u32[144,128]{1,0:T(1,128)}', space=vmem, size = 0x12000, scoped, tag = 'internal scratch']
  %s0 = inlined_call_operand.hbm [shape: s32[1,384], index: 0, kind: input, shape index: {}]
  %s1 = inlined_call_operand.hbm [shape: f32[16,128], index: 1, kind: input, shape index: {}]
  %s2 = inlined_call_operand.hbm [shape: f32[16,384], index: 2, kind: output, shape index: {}]
  %s3 = sld [smem:[#allocation0]]
  $region26: #{tpu_custom_call.1} parent=0
    _
  %s5 = ssub.s32 1, %s3
  %s6 = scalar_select 0, %s5, %s3
  $region1: #{tpu_custom_call.1} parent=0
    #allocation2 [shape = 'u8[1536]{0}', space=vmem, size = 0x800, scoped, tag = 'input window, operand 0, single buffered']
    #allocation3 [shape = 's32[1]{0}', space=sflag, size = 0x4, scoped, tag = 'scoped memory for tpu_custom_call.1']
    #allocation4 [shape = 's32[1]{0}', space=sflag, size = 0x4, scoped, tag = 'scoped memory for tpu_custom_call.1']
    #allocation5 [shape = 'u8[8192]{0}', space=vmem, size = 0x2000, scoped, tag = 'input window, operand 1, single buffered']
    #allocation6 [shape = 's32[1]{0}', space=sflag, size = 0x4, scoped, tag = 'scoped memory for tpu_custom_call.1']
    #allocation7 [shape = 'u8[24576]{0}', space=vmem, size = 0x6000, scoped, tag = 'output window, operand 0, single buffered']
    %7 = vsyncpa [#allocation3], 0
    %8 = vsyncpa [#allocation6], 0
    %9 = vsyncpa [#allocation4], 0
    // Predicated region
    $region2: #{tpu_custom_call.1} parent=1 // pred_check
      _
    $region3: #{tpu_custom_call.1} parent=1 // pred_check_branch
      %11 = sbr.rel (0) target = $region5
    $region4: #{tpu_custom_call.1} parent=1 // pred_region
      %s13 = ssub.s32 48, 48
      %14 = vsyncadd [#allocation3], %s13
      %s16 = sshll.u32 [#allocation2], 4
      %s17 = int_to_ptr.vmem [resolvable:$true] %s16
      %19 = dma.hbm_to_vmem [thread:$0]  %s0, 48, %s17, [#allocation3]
    $region5: #{tpu_custom_call.1} parent=1 // pred_fallthru
      _
    // Predicated region
    $region6: #{tpu_custom_call.1} parent=1 // pred_check
      _
    $region7: #{tpu_custom_call.1} parent=1 // pred_check_branch
      %21 = sbr.rel (0) target = $region9
    $region8: #{tpu_custom_call.1} parent=1 // pred_region
      %s23 = ssub.s32 256, 256
      %24 = vsyncadd [#allocation6], %s23
      %s25 = sshll.u32 [#allocation5], 4
      %s26 = int_to_ptr.vmem [resolvable:$true] %s25
      %31 = dma.hbm_to_vmem [thread:$0]  %s1, 256, %s26, [#allocation6], 128, 128, 8
    $region9: #{tpu_custom_call.1} parent=1 // pred_fallthru
      _
    // Predicated region
    $region10: #{tpu_custom_call.1} parent=1 // pred_check
      _
    $region11: #{tpu_custom_call.1} parent=1 // pred_check_branch
      %33 = sbr.rel (0) target = $region13
    $region12: #{tpu_custom_call.1} parent=1 // pred_region
      %34 = dma.done [#allocation3], 48
    $region13: #{tpu_custom_call.1} parent=1 // pred_fallthru
      _
    // Predicated region
    $region14: #{tpu_custom_call.1} parent=1 // pred_check
      _
    $region15: #{tpu_custom_call.1} parent=1 // pred_check_branch
      %36 = sbr.rel (0) target = $region17
    $region16: #{tpu_custom_call.1} parent=1 // pred_region
      %37 = dma.done [#allocation6], 256
    $region17: #{tpu_custom_call.1} parent=1 // pred_fallthru
      _
    %v38 = vld [vmem:[#allocation2] sm:$0x7]
    %v39 = vlaneseq
    %v40 = vshrl.u32 %v39, 7
    %v41 = vadd.s32 %v40, 8
    %v42 = vadd.s32 %v40, 16
    %v43 = vadd.s32 %v40, 24
    %v44 = vadd.s32 %v40, 32
    %v45 = vadd.s32 %v40, 40
    %v46 = vadd.s32 %v40, 48
    %v47 = vadd.s32 %v40, 56
    %v48 = vadd.s32 %v40, 64
    %v49 = vadd.s32 %v40, 72
    %v50 = vadd.s32 %v40, 80
    %v51 = vadd.s32 %v40, 88
    %v52 = vadd.s32 %v40, 96
    %v53 = vadd.s32 %v40, 104
    %v54 = vadd.s32 %v40, 112
    %v55 = vadd.s32 %v40, 120
    %v56 = vlaneseq
    %v57 = vshrl.u32 %v56, 7
    %v58 = vsub.s32 0, %v57
    %v59 = vrot.slane %v38, %v58
    %v60 = vlaneseq
    %v61 = vshrl.u32 %v60, 7
    %v62 = vsub.s32 1, %v61
    %v63 = vrot.slane %v38, %v62
    %v64 = vlaneseq
    %v65 = vshrl.u32 %v64, 7
    %v66 = vsub.s32 2, %v65
    %v67 = vrot.slane %v38, %v66
    %vm68 = vcmp.eq.s32.totalorder %v40, %v59
    %vm69 = vcmp.eq.s32.totalorder %v40, %v63
    %vm70 = vcmp.eq.s32.totalorder %v40, %v67
    %vm71 = vcmp.eq.s32.totalorder %v41, %v59
    %vm72 = vcmp.eq.s32.totalorder %v41, %v63
    %vm73 = vcmp.eq.s32.totalorder %v41, %v67
    %vm74 = vcmp.eq.s32.totalorder %v42, %v59
    %vm75 = vcmp.eq.s32.totalorder %v42, %v63
    %vm76 = vcmp.eq.s32.totalorder %v42, %v67
    %vm77 = vcmp.eq.s32.totalorder %v43, %v59
    %vm78 = vcmp.eq.s32.totalorder %v43, %v63
    %vm79 = vcmp.eq.s32.totalorder %v43, %v67
    %vm80 = vcmp.eq.s32.totalorder %v44, %v59
    %vm81 = vcmp.eq.s32.totalorder %v44, %v63
    %vm82 = vcmp.eq.s32.totalorder %v44, %v67
    %vm83 = vcmp.eq.s32.totalorder %v45, %v59
    %vm84 = vcmp.eq.s32.totalorder %v45, %v63
    %vm85 = vcmp.eq.s32.totalorder %v45, %v67
    %vm86 = vcmp.eq.s32.totalorder %v46, %v59
    %vm87 = vcmp.eq.s32.totalorder %v46, %v63
    %vm88 = vcmp.eq.s32.totalorder %v46, %v67
    %vm89 = vcmp.eq.s32.totalorder %v47, %v59
    %vm90 = vcmp.eq.s32.totalorder %v47, %v63
    %vm91 = vcmp.eq.s32.totalorder %v47, %v67
    %vm92 = vcmp.eq.s32.totalorder %v48, %v59
    %vm93 = vcmp.eq.s32.totalorder %v48, %v63
    %vm94 = vcmp.eq.s32.totalorder %v48, %v67
    %vm95 = vcmp.eq.s32.totalorder %v49, %v59
    %vm96 = vcmp.eq.s32.totalorder %v49, %v63
    %vm97 = vcmp.eq.s32.totalorder %v49, %v67
    %vm98 = vcmp.eq.s32.totalorder %v50, %v59
    %vm99 = vcmp.eq.s32.totalorder %v50, %v63
    %vm100 = vcmp.eq.s32.totalorder %v50, %v67
    %vm101 = vcmp.eq.s32.totalorder %v51, %v59
    %vm102 = vcmp.eq.s32.totalorder %v51, %v63
    %vm103 = vcmp.eq.s32.totalorder %v51, %v67
    %vm104 = vcmp.eq.s32.totalorder %v52, %v59
    %vm105 = vcmp.eq.s32.totalorder %v52, %v63
    %vm106 = vcmp.eq.s32.totalorder %v52, %v67
    %vm107 = vcmp.eq.s32.totalorder %v53, %v59
    %vm108 = vcmp.eq.s32.totalorder %v53, %v63
    %vm109 = vcmp.eq.s32.totalorder %v53, %v67
    %vm110 = vcmp.eq.s32.totalorder %v54, %v59
    %vm111 = vcmp.eq.s32.totalorder %v54, %v63
    %vm112 = vcmp.eq.s32.totalorder %v54, %v67
    %vm113 = vcmp.eq.s32.totalorder %v55, %v59
    %vm114 = vcmp.eq.s32.totalorder %v55, %v63
    %vm115 = vcmp.eq.s32.totalorder %v55, %v67
    %v116 = vsel %vm68, 1, 0
    %v117 = vsel %vm69, 1, 0
    %v118 = vsel %vm70, 1, 0
    %v119 = vsel %vm71, 1, 0
    %v120 = vsel %vm72, 1, 0
    %v121 = vsel %vm73, 1, 0
    %v122 = vsel %vm74, 1, 0
    %v123 = vsel %vm75, 1, 0
    %v124 = vsel %vm76, 1, 0
    %v125 = vsel %vm77, 1, 0
    %v126 = vsel %vm78, 1, 0
    %v127 = vsel %vm79, 1, 0
    %v128 = vsel %vm80, 1, 0
    %v129 = vsel %vm81, 1, 0
    %v130 = vsel %vm82, 1, 0
    %v131 = vsel %vm83, 1, 0
    %v132 = vsel %vm84, 1, 0
    %v133 = vsel %vm85, 1, 0
    %v134 = vsel %vm86, 1, 0
    %v135 = vsel %vm87, 1, 0
    %v136 = vsel %vm88, 1, 0
    %v137 = vsel %vm89, 1, 0
    %v138 = vsel %vm90, 1, 0
    %v139 = vsel %vm91, 1, 0
    %v140 = vsel %vm92, 1, 0
    %v141 = vsel %vm93, 1, 0
    %v142 = vsel %vm94, 1, 0
    %v143 = vsel %vm95, 1, 0
    %v144 = vsel %vm96, 1, 0
    %v145 = vsel %vm97, 1, 0
    %v146 = vsel %vm98, 1, 0
    %v147 = vsel %vm99, 1, 0
    %v148 = vsel %vm100, 1, 0
    %v149 = vsel %vm101, 1, 0
    %v150 = vsel %vm102, 1, 0
    %v151 = vsel %vm103, 1, 0
    %v152 = vsel %vm104, 1, 0
    %v153 = vsel %vm105, 1, 0
    %v154 = vsel %vm106, 1, 0
    %v155 = vsel %vm107, 1, 0
    %v156 = vsel %vm108, 1, 0
    %v157 = vsel %vm109, 1, 0
    %v158 = vsel %vm110, 1, 0
    %v159 = vsel %vm111, 1, 0
    %v160 = vsel %vm112, 1, 0
    %v161 = vsel %vm113, 1, 0
    %v162 = vsel %vm114, 1, 0
    %v163 = vsel %vm115, 1, 0
    %v164 = vcvt.s32.f32 %v116
    %v165 = vcvt.s32.f32 %v117
    %v166 = vcvt.s32.f32 %v118
    %v167 = vcvt.s32.f32 %v119
    %v168 = vcvt.s32.f32 %v120
    %v169 = vcvt.s32.f32 %v121
    %v170 = vcvt.s32.f32 %v122
    %v171 = vcvt.s32.f32 %v123
    %v172 = vcvt.s32.f32 %v124
    %v173 = vcvt.s32.f32 %v125
    %v174 = vcvt.s32.f32 %v126
    %v175 = vcvt.s32.f32 %v127
    %v176 = vcvt.s32.f32 %v128
    %v177 = vcvt.s32.f32 %v129
    %v178 = vcvt.s32.f32 %v130
    %v179 = vcvt.s32.f32 %v131
    %v180 = vcvt.s32.f32 %v132
    %v181 = vcvt.s32.f32 %v133
    %v182 = vcvt.s32.f32 %v134
    %v183 = vcvt.s32.f32 %v135
    %v184 = vcvt.s32.f32 %v136
    %v185 = vcvt.s32.f32 %v137
    %v186 = vcvt.s32.f32 %v138
    %v187 = vcvt.s32.f32 %v139
    %v188 = vcvt.s32.f32 %v140
    %v189 = vcvt.s32.f32 %v141
    %v190 = vcvt.s32.f32 %v142
    %v191 = vcvt.s32.f32 %v143
    %v192 = vcvt.s32.f32 %v144
    %v193 = vcvt.s32.f32 %v145
    %v194 = vcvt.s32.f32 %v146
    %v195 = vcvt.s32.f32 %v147
    %v196 = vcvt.s32.f32 %v148
    %v197 = vcvt.s32.f32 %v149
    %v198 = vcvt.s32.f32 %v150
    %v199 = vcvt.s32.f32 %v151
    %v200 = vcvt.s32.f32 %v152
    %v201 = vcvt.s32.f32 %v153
    %v202 = vcvt.s32.f32 %v154
    %v203 = vcvt.s32.f32 %v155
    %v204 = vcvt.s32.f32 %v156
    %v205 = vcvt.s32.f32 %v157
    %v206 = vcvt.s32.f32 %v158
    %v207 = vcvt.s32.f32 %v159
    %v208 = vcvt.s32.f32 %v160
    %v209 = vcvt.s32.f32 %v161
    %v210 = vcvt.s32.f32 %v162
    %v211 = vcvt.s32.f32 %v163
    %v212 = vld [vmem:[#allocation5] sm:$0xff]
    %v213 = vld [vmem:[#allocation5 + $0x8] sm:$0xff]
    %214 = vmatprep.subr.mxu0 %v165
    %215 = vmatpush1.msra.mxu0 %v164
    %216 = vmatprep.subr.mxu0 %v168
    %217 = vmatpush1.msra.mxu0 %v167
    %218 = vmatprep.subr.mxu0 %v171
    %219 = vmatpush1.msra.mxu0 %v170
    %220 = vmatprep.subr.mxu0 %v174
    %221 = vmatpush1.msra.mxu0 %v173
    %222 = vmatprep.subr.mxu0 %v177
    %223 = vmatpush1.msra.mxu0 %v176
    %224 = vmatprep.subr.mxu0 %v180
    %225 = vmatpush1.msra.mxu0 %v179
    %226 = vmatprep.subr.mxu0 %v183
    %227 = vmatpush1.msra.mxu0 %v182
    %228 = vmatprep.subr.mxu0 %v186
    %229 = vmatpush1.msra.mxu0 %v185
    %230 = vmatprep.subr.mxu0 %v189
    %231 = vmatpush1.msra.mxu0 %v188
    %232 = vmatprep.subr.mxu0 %v192
    %233 = vmatpush1.msra.mxu0 %v191
    %234 = vmatprep.subr.mxu0 %v195
    %235 = vmatpush1.msra.mxu0 %v194
    %236 = vmatprep.subr.mxu0 %v198
    %237 = vmatpush1.msra.mxu0 %v197
    %238 = vmatprep.subr.mxu0 %v201
    %239 = vmatpush1.msra.mxu0 %v200
    %240 = vmatprep.subr.mxu0 %v204
    %241 = vmatpush1.msra.mxu0 %v203
    %242 = vmatprep.subr.mxu0 %v207
    %243 = vmatpush1.msra.mxu0 %v206
    %244 = vmatprep.subr.mxu0 %v210
    %245 = vmatpush1.msra.mxu0 %v209
    %246 = vmatprep.subr.mxu0 0.0
    %247 = vmatpush1.msra.mxu0 0.0
    %248 = vmatprep.subr.mxu0 0.0
    %249 = vmatpush1.msra.mxu0 0.0
    %250 = vmatprep.subr.mxu0 0.0
    %251 = vmatpush1.msra.mxu0 0.0
    %252 = vmatprep.subr.mxu0 0.0
    %253 = vmatpush1.msra.mxu0 0.0
    %254 = vmatprep.subr.mxu0 0.0
    %255 = vmatpush1.msra.mxu0 0.0
    %256 = vmatprep.subr.mxu0 0.0
    %257 = vmatpush1.msra.mxu0 0.0
    %258 = vmatprep.subr.mxu0 0.0
    %259 = vmatpush1.msra.mxu0 0.0
    %260 = vmatprep.subr.mxu0 0.0
    %261 = vmatpush1.msra.mxu0 0.0
    %262 = vmatprep.subr.mxu0 0.0
    %263 = vmatpush1.msra.mxu0 0.0
    %264 = vmatprep.subr.mxu0 0.0
    %265 = vmatpush1.msra.mxu0 0.0
    %266 = vmatprep.subr.mxu0 0.0
    %267 = vmatpush1.msra.mxu0 0.0
    %268 = vmatprep.subr.mxu0 0.0
    %269 = vmatpush1.msra.mxu0 0.0
    %270 = vmatprep.subr.mxu0 0.0
    %271 = vmatpush1.msra.mxu0 0.0
    %272 = vmatprep.subr.mxu0 0.0
    %273 = vmatpush1.msra.mxu0 0.0
    %274 = vmatprep.subr.mxu0 0.0
    %275 = vmatpush1.msra.mxu0 0.0
    %276 = vmatprep.subr.mxu0 0.0
    %277 = vmatpush1.msra.mxu0 0.0
    %278 = vmatprep.mubr.f32.mxu0 0.0
    %279 = vmatmul.mubr.f32.gmra.mrb[0].mxu0 %v212
    %v280 = vpop.f32.mrb[0].mxu0
    %v281 = vadd.f32 0.0, %v280
    %v282 = vpop.f32.mrb[0].mxu0
    %v283 = vadd.f32 0.0, %v282
    %284 = vmatprep.mubr.f32.mxu0 0.0
    %285 = vmatmul.mubr.f32.gmra.mrb[0].mxu0 %v213
    %v286 = vpop.f32.mrb[0].mxu0
    %v287 = vadd.f32 0.0, %v286
    %v288 = vpop.f32.mrb[0].mxu0
    %v289 = vadd.f32 0.0, %v288
    %290 = vdwg.mxu0
    %291 = vmatprep.subr.mxu0 0.0
    %292 = vmatpush1.msra.mxu0 %v166
    %293 = vmatprep.subr.mxu0 0.0
    %294 = vmatpush1.msra.mxu0 %v169
    %295 = vmatprep.subr.mxu0 0.0
    %296 = vmatpush1.msra.mxu0 %v172
    %297 = vmatprep.subr.mxu0 0.0
    %298 = vmatpush1.msra.mxu0 %v175
    %299 = vmatprep.subr.mxu0 0.0
    %300 = vmatpush1.msra.mxu0 %v178
    %301 = vmatprep.subr.mxu0 0.0
    %302 = vmatpush1.msra.mxu0 %v181
    %303 = vmatprep.subr.mxu0 0.0
    %304 = vmatpush1.msra.mxu0 %v184
    %305 = vmatprep.subr.mxu0 0.0
    %306 = vmatpush1.msra.mxu0 %v187
    %307 = vmatprep.subr.mxu0 0.0
    %308 = vmatpush1.msra.mxu0 %v190
    %309 = vmatprep.subr.mxu0 0.0
    %310 = vmatpush1.msra.mxu0 %v193
    %311 = vmatprep.subr.mxu0 0.0
    %312 = vmatpush1.msra.mxu0 %v196
    %313 = vmatprep.subr.mxu0 0.0
    %314 = vmatpush1.msra.mxu0 %v199
    %315 = vmatprep.subr.mxu0 0.0
    %316 = vmatpush1.msra.mxu0 %v202
    %317 = vmatprep.subr.mxu0 0.0
    %318 = vmatpush1.msra.mxu0 %v205
    %319 = vmatprep.subr.mxu0 0.0
    %320 = vmatpush1.msra.mxu0 %v208
    %321 = vmatprep.subr.mxu0 0.0
    %322 = vmatpush1.msra.mxu0 %v211
    %323 = vmatprep.subr.mxu0 0.0
    %324 = vmatpush1.msra.mxu0 0.0
    %325 = vmatprep.subr.mxu0 0.0
    %326 = vmatpush1.msra.mxu0 0.0
    %327 = vmatprep.subr.mxu0 0.0
    %328 = vmatpush1.msra.mxu0 0.0
    %329 = vmatprep.subr.mxu0 0.0
    %330 = vmatpush1.msra.mxu0 0.0
    %331 = vmatprep.subr.mxu0 0.0
    %332 = vmatpush1.msra.mxu0 0.0
    %333 = vmatprep.subr.mxu0 0.0
    %334 = vmatpush1.msra.mxu0 0.0
    %335 = vmatprep.subr.mxu0 0.0
    %336 = vmatpush1.msra.mxu0 0.0
    %337 = vmatprep.subr.mxu0 0.0
    %338 = vmatpush1.msra.mxu0 0.0
    %339 = vmatprep.subr.mxu0 0.0
    %340 = vmatpush1.msra.mxu0 0.0
    %341 = vmatprep.subr.mxu0 0.0
    %342 = vmatpush1.msra.mxu0 0.0
    %343 = vmatprep.subr.mxu0 0.0
    %344 = vmatpush1.msra.mxu0 0.0
    %345 = vmatprep.subr.mxu0 0.0
    %346 = vmatpush1.msra.mxu0 0.0
    %347 = vmatprep.subr.mxu0 0.0
    %348 = vmatpush1.msra.mxu0 0.0
    %349 = vmatprep.subr.mxu0 0.0
    %350 = vmatpush1.msra.mxu0 0.0
    %351 = vmatprep.subr.mxu0 0.0
    %352 = vmatpush1.msra.mxu0 0.0
    %353 = vmatprep.subr.mxu0 0.0
    %354 = vmatpush1.msra.mxu0 0.0
    %355 = vmatprep.mubr.f32.mxu0 0.0
    %356 = vmatmul.mubr.f32.gmra.mrb[0].mxu0 %v212
    %v357 = vpop.f32.mrb[0].mxu0
    %v358 = vadd.f32 0.0, %v357
    %v359 = vpop.f32.mrb[0].mxu0
    %360 = vmatprep.mubr.f32.mxu0 0.0
    %361 = vmatmul.mubr.f32.gmra.mrb[0].mxu0 %v213
    %v362 = vpop.f32.mrb[0].mxu0
    %v363 = vadd.f32 0.0, %v362
    %v364 = vpop.f32.mrb[0].mxu0
    %365 = vdwg.mxu0
    %366 = vst [vmem:[#allocation7] sm:$0xff] %v281
    %367 = vst [vmem:[#allocation7 + $0x8] sm:$0xff] %v283
    %368 = vst [vmem:[#allocation7 + $0x10] sm:$0xff] %v358
    %369 = vst [vmem:[#allocation7 + $0x18] sm:$0xff] %v287
    %370 = vst [vmem:[#allocation7 + $0x20] sm:$0xff] %v289
    %371 = vst [vmem:[#allocation7 + $0x28] sm:$0xff] %v363
    // Predicated region
    $region18: #{tpu_custom_call.1} parent=1 // pred_check
      _
    $region19: #{tpu_custom_call.1} parent=1 // pred_check_branch
      %373 = sbr.rel (0) target = $region21
    $region20: #{tpu_custom_call.1} parent=1 // pred_region
      %s375 = ssub.s32 768, 768
      %376 = vsyncadd [#allocation4], %s375
      %s377 = sshll.u32 [#allocation7], 4
      %s378 = int_to_ptr.vmem [resolvable:$true] %s377
      %383 = dma.vmem_to_hbm [thread:$0]  %s378, 768, %s2, [#allocation4], 384, 384, 24
    $region21: #{tpu_custom_call.1} parent=1 // pred_fallthru
      _
    // Predicated region
    $region22: #{tpu_custom_call.1} parent=1 // pred_check
      _
    $region23: #{tpu_custom_call.1} parent=1 // pred_check_branch
      %385 = sbr.rel (0) target = $region25
    $region24: #{tpu_custom_call.1} parent=1 // pred_region
      %386 = dma.done [#allocation4], 768
    $region25: #{tpu_custom_call.1} parent=1 // pred_fallthru
      _
    %387 = vsyncpa [#allocation3], 1
    %388 = vsyncpa [#allocation6], 1
    %389 = vsyncpa [#allocation4], 1

</llo_original>
